<compile_context>
chip_gen: v7x
topology: tpu7x:2x2x1
jax: 0.10.0
libtpu: 0.0.40
codegen_flags: <defaults>
</compile_context>

<pallas_src>
import functools

import jax
import jax.numpy as jnp
from jax.experimental import pallas as pl
from jax.experimental.pallas import tpu as pltpu

_LANE = 128


def _round_up(x, m):
    return ((x + m - 1) // m) * m


def _vmem_budget_bytes():
    """~75% of this generation's VMEM (leaves compiler headroom; ~48 MiB on v7x)."""
    try:
        cap = int(pltpu.get_tpu_info().vmem_capacity_bytes)
    except Exception:
        cap = 64 * 1024 * 1024
    return cap * 3 // 4


def _pick_tile(n, budget):
    """Largest 128-multiple tile (budget-aware cap) that divides n (n % 128 == 0)."""
    prefer = (512, 256, 128) if budget >= 80 * 1024 * 1024 else (256, 128)
    for t in prefer:
        if t <= n and n % t == 0:
            return t
    return min(n, _LANE)


# ---------------------------------------------------------------------------
# Kernel 1: head-batched projection + fused per-node attention scores (+ residual)
# ---------------------------------------------------------------------------
def _gat_project_kernel(x_ref, w_ref, attn_ref, *rest, has_linear_residual):
    if has_linear_residual:
        wres_ref, z_ref, sc_ref, res_ref = rest
    else:
        z_ref, sc_ref = rest

    xb = x_ref[...].astype(jnp.bfloat16)                              # (T, Fin)
    z = jnp.dot(xb, w_ref[...], preferred_element_type=jnp.float32)   # (T, H*Fout)
    zb = z.astype(jnp.bfloat16)
    z_ref[...] = zb                                                    # bf16 activations
    # per-node attention scores for every head: [el | er] = z @ [albd | arbd]
    sc_ref[...] = jnp.dot(zb, attn_ref[...], preferred_element_type=jnp.float32)
    if has_linear_residual:
        res_ref[...] = jnp.dot(xb, wres_ref[...], preferred_element_type=jnp.float32)


# ---------------------------------------------------------------------------
# Kernel 2: edge softmax + aggregation with online (flash-style) softmax over src
# ---------------------------------------------------------------------------
def _gat_attn_kernel(mask_ref, adj_ref, z_ref, elt_ref, er_ref, *rest,
                     num_heads, out_feats, num_src_tiles, negative_slope,
                     apply_elu, has_residual):
    if has_residual:
        res_ref, out_ref, m_ref, l_ref, acc_ref = rest
    else:
        out_ref, m_ref, l_ref, acc_ref = rest

    H, Fout = num_heads, out_feats
    i = pl.program_id(0)
    j = pl.program_id(1)

    @pl.when(j == 0)
    def _init():
        m_ref[...] = jnp.full(m_ref.shape, -1e30, dtype=m_ref.dtype)
        l_ref[...] = jnp.zeros_like(l_ref)
        acc_ref[...] = jnp.zeros_like(acc_ref)

    # skip all-zero (dst_tile, src_tile) adjacency blocks (scalar-prefetched table)
    @pl.when(mask_ref[i * num_src_tiles + j] != 0)
    def _body():
        adj = adj_ref[...].astype(jnp.float32)          # (Td, Ts) {0,1}
        z_src = z_ref[...]                              # (Ts, H*Fout) bf16
        elt = elt_ref[...]                              # (H, Ts) f32 (pre-transposed)
        er = er_ref[...]                                # (Td, H) f32
        m_old = m_ref[...]
        l_old = l_ref[...]

        m_list, p_list = [], []
        for h in range(H):
            # e[dst, src] = leaky_relu(el[src] + er[dst])   (DGL u_add_v)
            e = er[:, h:h + 1] + elt[h:h + 1, :]         # (Td, Ts)
            e = jnp.where(e >= 0.0, e, negative_slope * e)
            m_h = jnp.maximum(m_old[:, h:h + 1],
                              jnp.max(e, axis=-1, keepdims=True))
            # multiplicative mask only (softmax shift cancels; no -inf bias buffer)
            p_list.append(jnp.exp(e - m_h) * adj)        # (Td, Ts)
            m_list.append(m_h)

        m_new = m_list[0] if H == 1 else jnp.concatenate(m_list, axis=-1)   # (Td, H)
        scale = jnp.exp(m_old - m_new)                                       # (Td, H)
        p_sum = [jnp.sum(p, axis=-1, keepdims=True) for p in p_list]
        p_sum = p_sum[0] if H == 1 else jnp.concatenate(p_sum, axis=-1)
        m_ref[...] = m_new
        l_ref[...] = scale * l_old + p_sum

        parts = [
            jnp.dot(p_list[h].astype(jnp.bfloat16),
                    z_src[:, h * Fout:(h + 1) * Fout],
                    preferred_element_type=jnp.float32)
            for h in range(H)
        ]
        part = parts[0] if H == 1 else jnp.concatenate(parts, axis=-1)       # (Td, HF)
        scale_f = [jnp.broadcast_to(scale[:, h:h + 1], (scale.shape[0], Fout))
                   for h in range(H)]
        scale_f = scale_f[0] if H == 1 else jnp.concatenate(scale_f, axis=-1)
        acc_ref[...] = scale_f * acc_ref[...] + part

    @pl.when(j == pl.num_programs(1) - 1)
    def _finalize():
        # guard zero in-degree (isolated / padded dst rows) -> exact 0 output
        inv = pl.reciprocal(jnp.maximum(l_ref[...], 1e-20), approx=True)     # (Td, H)
        inv_f = [jnp.broadcast_to(inv[:, h:h + 1], (inv.shape[0], Fout))
                 for h in range(H)]
        inv_f = inv_f[0] if H == 1 else jnp.concatenate(inv_f, axis=-1)
        rst = acc_ref[...] * inv_f
        if has_residual:
            rst = rst + res_ref[...].astype(jnp.float32)
        if apply_elu:
            # ELU(alpha=1); clamp so the untaken branch never overflows to inf
            rst = jnp.where(rst > 0.0, rst, jnp.exp(jnp.minimum(rst, 0.0)) - 1.0)
        # single full-width lane-dense store (concat kept since Fout % 128 != 0)
        out_ref[...] = rst.astype(out_ref.dtype)


# ---------------------------------------------------------------------------
# One GATConv layer (packed (Np, H*Fout) output == .flatten(1) of DGL's output)
# ---------------------------------------------------------------------------
def gat_conv(x, adj_i8, tile_mask, W, attn_l, attn_r, Wres, *, negative_slope,
             apply_elu, residual_mode, tile_dst, tile_src, out_dtype, budget):
    Np, Fin = x.shape
    H, _, Fout = W.shape
    HF = H * Fout

    # -- host-side parameter packing (head-major packed columns, bf16 MXU operands)
    W_all = jnp.transpose(W, (1, 0, 2)).reshape(Fin, HF).astype(jnp.bfloat16)
    eye_h = jnp.eye(H, dtype=jnp.float32)
    albd = (attn_l.reshape(H, Fout)[:, :, None] * eye_h[:, None, :]).reshape(HF, H)
    arbd = (attn_r.reshape(H, Fout)[:, :, None] * eye_h[:, None, :]).reshape(HF, H)
    attn_lr = jnp.concatenate([albd, arbd], axis=1).astype(jnp.bfloat16)   # (HF, 2H)

    # -- kernel 1: projection --------------------------------------------------
    tile_n = _pick_tile(Np, budget)
    proj_cp = pltpu.CompilerParams(dimension_semantics=("parallel",),
                                   vmem_limit_bytes=int(budget))

    if residual_mode == "linear":
        Wres_all = jnp.transpose(Wres, (1, 0, 2)).reshape(Fin, HF).astype(jnp.bfloat16)
        z, scores, res = pl.pallas_call(
            functools.partial(_gat_project_kernel, has_linear_residual=True),
            out_shape=(jax.ShapeDtypeStruct((Np, HF), jnp.bfloat16),
                       jax.ShapeDtypeStruct((Np, 2 * H), jnp.float32),
                       jax.ShapeDtypeStruct((Np, HF), jnp.float32)),
            grid=(Np // tile_n,),
            in_specs=[pl.BlockSpec((tile_n, Fin), lambda i: (i, 0)),
                      pl.BlockSpec((Fin, HF), lambda i: (0, 0)),
                      pl.BlockSpec((HF, 2 * H), lambda i: (0, 0)),
                      pl.BlockSpec((Fin, HF), lambda i: (0, 0))],
            out_specs=(pl.BlockSpec((tile_n, HF), lambda i: (i, 0)),
                       pl.BlockSpec((tile_n, 2 * H), lambda i: (i, 0)),
                       pl.BlockSpec((tile_n, HF), lambda i: (i, 0))),
            compiler_params=proj_cp,
        )(x, W_all, attn_lr, Wres_all)
    else:
        z, scores = pl.pallas_call(
            functools.partial(_gat_project_kernel, has_linear_residual=False),
            out_shape=(jax.ShapeDtypeStruct((Np, HF), jnp.bfloat16),
                       jax.ShapeDtypeStruct((Np, 2 * H), jnp.float32)),
            grid=(Np // tile_n,),
            in_specs=[pl.BlockSpec((tile_n, Fin), lambda i: (i, 0)),
                      pl.BlockSpec((Fin, HF), lambda i: (0, 0)),
                      pl.BlockSpec((HF, 2 * H), lambda i: (0, 0))],
            out_specs=(pl.BlockSpec((tile_n, HF), lambda i: (i, 0)),
                       pl.BlockSpec((tile_n, 2 * H), lambda i: (i, 0))),
            compiler_params=proj_cp,
        )(x, W_all, attn_lr)
        if residual_mode == "identity":
            assert Fin == HF, "identity residual requires in_feats == H*out_feats"
            res = x                      # identity residual: just add x, no matmul
        else:
            res = None

    el_t = scores[:, :H].T               # (H, Np): transpose hoisted out of the kernel
    er = scores[:, H:]                   # (Np, H)

    # -- kernel 2: attention + aggregation, (dst, src) tiled ------------------
    nd, ns = Np // tile_dst, Np // tile_src
    has_residual = residual_mode != "none"

    in_specs = [
        pl.BlockSpec((tile_dst, tile_src), lambda i, j, m: (i, j)),   # adj (int8)
        pl.BlockSpec((tile_src, HF), lambda i, j, m: (j, 0)),         # z (bf16)
        pl.BlockSpec((H, tile_src), lambda i, j, m: (0, j)),          # el^T
        pl.BlockSpec((tile_dst, H), lambda i, j, m: (i, 0)),          # er
    ]
    args = [adj_i8, z, el_t, er]
    if has_residual:
        in_specs.append(pl.BlockSpec((tile_dst, HF), lambda i, j, m: (i, 0)))
        args.append(res)

    out_itemsize = jnp.dtype(out_dtype).itemsize
    est = (2 * tile_dst * tile_src                    # adj (int8), double buffered
           + 2 * tile_src * HF * 2                    # z (bf16)
           + 2 * (H * tile_src + tile_dst * H) * 4    # el^T / er
           + (2 * tile_dst * HF * 4 if has_residual else 0)
           + 2 * tile_dst * HF * out_itemsize
           + (2 * 2 * tile_dst * H + tile_dst * HF) * 4   # m / l / acc scratch
           + 8 * tile_dst * tile_src * 4)             # per-head live temporaries
    vmem_limit = int(min(max(2 * est, 32 * 1024 * 1024), budget))

    out = pl.pallas_call(
        functools.partial(_gat_attn_kernel, num_heads=H, out_feats=Fout,
                          num_src_tiles=ns, negative_slope=negative_slope,
                          apply_elu=apply_elu, has_residual=has_residual),
        out_shape=jax.ShapeDtypeStruct((Np, HF), out_dtype),
        grid_spec=pltpu.PrefetchScalarGridSpec(
            num_scalar_prefetch=1,
            grid=(nd, ns),
            in_specs=in_specs,
            out_specs=pl.BlockSpec((tile_dst, HF), lambda i, j, m: (i, 0)),
            scratch_shapes=[pltpu.VMEM((tile_dst, H), jnp.float32),    # running max
                            pltpu.VMEM((tile_dst, H), jnp.float32),    # running sum
                            pltpu.VMEM((tile_dst, HF), jnp.float32)]), # accumulator
        compiler_params=pltpu.CompilerParams(
            dimension_semantics=("parallel", "arbitrary"),
            vmem_limit_bytes=vmem_limit),
    )(tile_mask, *args)
    return out                                        # (Np, H*Fout)


# ---------------------------------------------------------------------------
# Parameter construction + full forward pass (matches the PyTorch GAT module)
# ---------------------------------------------------------------------------
def _make_layer_params(key, in_feats, out_feats, num_heads, residual):
    k1, k2, k3, k4 = jax.random.split(key, 4)
    scale_w = (2.0 / (in_feats + out_feats)) ** 0.5
    W = scale_w * jax.random.normal(k1, (num_heads, in_feats, out_feats), jnp.float32)
    attn_l = 0.1 * jax.random.normal(k2, (num_heads, 1, out_feats), jnp.float32)
    attn_r = 0.1 * jax.random.normal(k3, (num_heads, 1, out_feats), jnp.float32)
    if not residual:
        mode, Wres = "none", None
    elif in_feats == num_heads * out_feats:
        mode, Wres = "identity", None                  # DGL uses Identity res_fc here
    else:
        mode = "linear"
        Wres = scale_w * jax.random.normal(
            k4, (num_heads, in_feats, out_feats), jnp.float32)
    return dict(W=W, al=attn_l, ar=attn_r, Wres=Wres, residual_mode=mode)


def init_gat_params(key, num_layers, in_dim, num_hidden, num_classes, heads, residual):
    keys = jax.random.split(key, num_layers + 1)
    params = [_make_layer_params(keys[0], in_dim, num_hidden, heads[0], True)]
    for l in range(1, num_layers):
        params.append(_make_layer_params(
            keys[l], num_hidden * heads[l - 1], num_hidden, heads[l], residual))
    params.append(_make_layer_params(
        keys[num_layers], num_hidden * heads[-2], num_classes, heads[-1], residual))
    return params


def gat_forward(params, adj, inputs, *, num_layers, negative_slope=0.2):
    N = inputs.shape[0]
    budget = _vmem_budget_bytes()
    Np = _round_up(max(N, _LANE), _LANE)

    # pad nodes to a lane multiple (padded rows have zero in-degree -> output 0)
    x = jnp.pad(inputs.astype(jnp.float32), ((0, Np - N), (0, 0)))
    adj_i8 = jnp.pad((adj > 0).astype(jnp.int8), ((0, Np - N), (0, Np - N)))

    tile_dst = _pick_tile(Np, budget)
    tile_src = _pick_tile(Np, budget)
    nd, ns = Np // tile_dst, Np // tile_src
    # per-(dst_tile, src_tile) nonzero table for sparsity skipping (SMEM prefetch)
    tile_mask = (adj_i8.reshape(nd, tile_dst, ns, tile_src) != 0).any(
        axis=(1, 3)).astype(jnp.int32).reshape(-1)

    h = x
    for l in range(num_layers):
        p = params[l]
        h = gat_conv(h, adj_i8, tile_mask, p["W"], p["al"], p["ar"], p["Wres"],
                     negative_slope=negative_slope, apply_elu=True,
                     residual_mode=p["residual_mode"], tile_dst=tile_dst,
                     tile_src=tile_src, out_dtype=jnp.bfloat16, budget=budget)
    p = params[-1]
    out = gat_conv(h, adj_i8, tile_mask, p["W"], p["al"], p["ar"], p["Wres"],
                   negative_slope=negative_slope, apply_elu=False,
                   residual_mode=p["residual_mode"], tile_dst=tile_dst,
                   tile_src=tile_src, out_dtype=jnp.float32, budget=budget)
    H_last, C = p["W"].shape[0], p["W"].shape[2]
    return out.reshape(Np, H_last, C).mean(axis=1)[:N]     # mean over heads


# ---------------------------------------------------------------------------
# Pure-JAX (f32) reference for validation
# ---------------------------------------------------------------------------
def _gat_conv_ref(x, adj, W, al, ar, Wres, mode, negative_slope, apply_elu):
    N = x.shape[0]
    H, _, Fout = W.shape
    z = jnp.einsum("nf,hfo->nho", x, W)                              # (N, H, Fout)
    el = jnp.sum(z * al.reshape(1, H, Fout), axis=-1)                # (N, H)
    er = jnp.sum(z * ar.reshape(1, H, Fout), axis=-1)                # (N, H)
    e = er[:, None, :] + el[None, :, :]                              # (dst, src, H)
    e = jnp.where(e >= 0, e, negative_slope * e)
    w = jnp.exp(e - jnp.max(e, axis=1, keepdims=True)) * adj[:, :, None]
    alpha = w / jnp.maximum(jnp.sum(w, axis=1, keepdims=True), 1e-20)
    rst = jnp.einsum("dsh,sho->dho", alpha, z)                       # (dst, H, Fout)
    if mode == "linear":
        rst = rst + jnp.einsum("nf,hfo->nho", x, Wres)
    elif mode == "identity":
        rst = rst + x.reshape(N, H, Fout)
    if apply_elu:
        rst = jnp.where(rst > 0, rst, jnp.exp(jnp.minimum(rst, 0.0)) - 1.0)
    return rst.reshape(N, H * Fout)


def gat_forward_ref(params, adj, x, *, num_layers, negative_slope=0.2):
    h = x
    for l in range(num_layers):
        p = params[l]
        h = _gat_conv_ref(h, adj, p["W"], p["al"], p["ar"], p["Wres"],
                          p["residual_mode"], negative_slope, True)
    p = params[-1]
    out = _gat_conv_ref(h, adj, p["W"], p["al"], p["ar"], p["Wres"],
                        p["residual_mode"], negative_slope, False)
    H_last, C = p["W"].shape[0], p["W"].shape[2]
    return out.reshape(-1, H_last, C).mean(axis=1)


if __name__ == "__main__":
    # small deterministic setup (padded to Np=640 -> multiple dst/src tiles)
    N = 600
    num_layers = 2
    in_dim = 32
    num_hidden = 32
    num_classes = 8
    heads = [2, 2, 1]
    negative_slope = 0.2
    residual = True       # exercises identity + linear residual paths

    root = jax.random.PRNGKey(0)
    k_feat, k_adj, k_par = jax.random.split(root, 3)

    x = jax.random.normal(k_feat, (N, in_dim), jnp.float32)
    # dense adjacency (dst, src) with self loops so no node has zero in-degree
    adj = jax.random.bernoulli(k_adj, 0.05, (N, N)).astype(jnp.float32)
    adj = jnp.clip(adj + jnp.eye(N, dtype=jnp.float32), 0.0, 1.0)

    params = init_gat_params(k_par, num_layers, in_dim, num_hidden,
                             num_classes, heads, residual)

    logits = gat_forward(params, adj, x, num_layers=num_layers,
                         negative_slope=negative_slope)
    logits = jax.block_until_ready(logits)

    ref = jax.block_until_ready(
        gat_forward_ref(params, adj, x, num_layers=num_layers,
                        negative_slope=negative_slope))

    assert logits.shape == (N, num_classes)
    assert bool(jnp.all(jnp.isfinite(logits)))
    # bf16 activations + approx reciprocal -> loose tolerance vs the f32 reference
    assert bool(jnp.allclose(logits, ref, rtol=2e-1, atol=2e-1)), (
        "max abs diff = %f" % float(jnp.max(jnp.abs(logits - ref))))
    print("KERNEL_OK")
</pallas_src>

<mosaic_0001>
module attributes {stable_mosaic.version = 11 : i64} {
  func.func @_gat_project_kernel(%arg0: i32, %arg1: memref<128x32xf32, #tpu.memory_space<vmem>>, %arg2: memref<32x64xbf16, #tpu.memory_space<vmem>>, %arg3: memref<64x4xbf16, #tpu.memory_space<vmem>>, %arg4: memref<32x64xbf16, #tpu.memory_space<vmem>>, %arg5: memref<128x64xbf16, #tpu.memory_space<vmem>>, %arg6: memref<128x4xf32, #tpu.memory_space<vmem>>, %arg7: memref<128x64xf32, #tpu.memory_space<vmem>>) attributes {dimension_semantics = [#tpu.dimension_semantics<parallel>], iteration_bounds = array<i64: 5>, scalar_prefetch = 0 : i64, scratch_operands = 0 : i64, tpu.core_type = #tpu.core_type<tc>, window_params = [{transform_indices = @transform_0, window_bounds = array<i64: 128, 32>}, {pipeline_mode = #tpu.pipeline_mode<synchronous>, transform_indices = @transform_1, window_bounds = array<i64: 32, 64>}, {pipeline_mode = #tpu.pipeline_mode<synchronous>, transform_indices = @transform_2, window_bounds = array<i64: 64, 4>}, {pipeline_mode = #tpu.pipeline_mode<synchronous>, transform_indices = @transform_3, window_bounds = array<i64: 32, 64>}, {transform_indices = @transform_4, window_bounds = array<i64: 128, 64>}, {transform_indices = @transform_5, window_bounds = array<i64: 128, 4>}, {transform_indices = @transform_6, window_bounds = array<i64: 128, 64>}]} {
    %c0 = arith.constant 0 : index
    %c0_0 = arith.constant 0 : index
    %0 = vector.load %arg1[%c0, %c0_0] : memref<128x32xf32, #tpu.memory_space<vmem>>, vector<128x32xf32>
    %1 = arith.truncf %0 : vector<128x32xf32> to vector<128x32xbf16>
    %c0_1 = arith.constant 0 : index
    %c0_2 = arith.constant 0 : index
    %2 = vector.load %arg2[%c0_1, %c0_2] : memref<32x64xbf16, #tpu.memory_space<vmem>>, vector<32x64xbf16>
    %cst = arith.constant dense<0.000000e+00> : vector<128x64xf32>
    %3 = tpu.matmul %1, %2, %cst {dimension_numbers = #tpu.dot_dimension_numbers<[1], [0], [0], [1], [0, 0, 1, 1], [], []>} : vector<128x32xbf16>, vector<32x64xbf16>, vector<128x64xf32> -> vector<128x64xf32>
    %4 = arith.truncf %3 : vector<128x64xf32> to vector<128x64xbf16>
    %c0_3 = arith.constant 0 : index
    %c0_4 = arith.constant 0 : index
    %5 = vector.load %arg5[%c0_3, %c0_4] : memref<128x64xbf16, #tpu.memory_space<vmem>>, vector<128x64xbf16>
    tpu.vector_store %arg5[%c0_3, %c0_4], %4 {strides = array<i32>} : memref<128x64xbf16, #tpu.memory_space<vmem>>, vector<128x64xbf16>,
    %c0_5 = arith.constant 0 : index
    %c0_6 = arith.constant 0 : index
    %6 = vector.load %arg3[%c0_5, %c0_6] : memref<64x4xbf16, #tpu.memory_space<vmem>>, vector<64x4xbf16>
    %cst_7 = arith.constant dense<0.000000e+00> : vector<128x4xf32>
    %7 = tpu.matmul %4, %6, %cst_7 {dimension_numbers = #tpu.dot_dimension_numbers<[1], [0], [0], [1], [0, 0, 1, 1], [], []>} : vector<128x64xbf16>, vector<64x4xbf16>, vector<128x4xf32> -> vector<128x4xf32>
    %c0_8 = arith.constant 0 : index
    %c0_9 = arith.constant 0 : index
    %8 = vector.load %arg6[%c0_8, %c0_9] : memref<128x4xf32, #tpu.memory_space<vmem>>, vector<128x4xf32>
    tpu.vector_store %arg6[%c0_8, %c0_9], %7 {strides = array<i32>} : memref<128x4xf32, #tpu.memory_space<vmem>>, vector<128x4xf32>,
    %c0_10 = arith.constant 0 : index
    %c0_11 = arith.constant 0 : index
    %9 = vector.load %arg4[%c0_10, %c0_11] : memref<32x64xbf16, #tpu.memory_space<vmem>>, vector<32x64xbf16>
    %cst_12 = arith.constant dense<0.000000e+00> : vector<128x64xf32>
    %10 = tpu.matmul %1, %9, %cst_12 {dimension_numbers = #tpu.dot_dimension_numbers<[1], [0], [0], [1], [0, 0, 1, 1], [], []>} : vector<128x32xbf16>, vector<32x64xbf16>, vector<128x64xf32> -> vector<128x64xf32>
    %c0_13 = arith.constant 0 : index
    %c0_14 = arith.constant 0 : index
    %11 = vector.load %arg7[%c0_13, %c0_14] : memref<128x64xf32, #tpu.memory_space<vmem>>, vector<128x64xf32>
    tpu.vector_store %arg7[%c0_13, %c0_14], %10 {strides = array<i32>} : memref<128x64xf32, #tpu.memory_space<vmem>>, vector<128x64xf32>,
    return
  }
  func.func @transform_0(%arg0: i32) -> (i32, i32) {
    %c0_i32 = arith.constant 0 : i32
    %c0_i32_0 = arith.constant 0 : i32
    return %arg0, %c0_i32 : i32, i32
  }
  func.func @transform_1(%arg0: i32) -> (i32, i32) {
    %c0_i32 = arith.constant 0 : i32
    %c0_i32_0 = arith.constant 0 : i32
    %c0_i32_1 = arith.constant 0 : i32
    return %c0_i32, %c0_i32_0 : i32, i32
  }
  func.func @transform_2(%arg0: i32) -> (i32, i32) {
    %c0_i32 = arith.constant 0 : i32
    %c0_i32_0 = arith.constant 0 : i32
    %c0_i32_1 = arith.constant 0 : i32
    return %c0_i32, %c0_i32_0 : i32, i32
  }
  func.func @transform_3(%arg0: i32) -> (i32, i32) {
    %c0_i32 = arith.constant 0 : i32
    %c0_i32_0 = arith.constant 0 : i32
    %c0_i32_1 = arith.constant 0 : i32
    return %c0_i32, %c0_i32_0 : i32, i32
  }
  func.func @transform_4(%arg0: i32) -> (i32, i32) {
    %c0_i32 = arith.constant 0 : i32
    %c0_i32_0 = arith.constant 0 : i32
    return %arg0, %c0_i32 : i32, i32
  }
  func.func @transform_5(%arg0: i32) -> (i32, i32) {
    %c0_i32 = arith.constant 0 : i32
    %c0_i32_0 = arith.constant 0 : i32
    return %arg0, %c0_i32 : i32, i32
  }
  func.func @transform_6(%arg0: i32) -> (i32, i32) {
    %c0_i32 = arith.constant 0 : i32
    %c0_i32_0 = arith.constant 0 : i32
    return %arg0, %c0_i32 : i32, i32
  }
}

</mosaic_0001>

<llo_original>
// kernel: tpu_custom_call.1
$region0: #{tpu_custom_call.1}
  #allocation0 [shape = 'u32[]', space=smem, size = 0x4, offset = 0x4, fixed_abs, tag = 'smem constant byte address 0x4 - core index']
  #allocation1 [shape = 'u32[144,128]{1,0:T(1,128)}', space=vmem, size = 0x12000, scoped, tag = 'internal scratch']
  %s0 = inlined_call_operand.vmem [shape: f32[640,32], index: 0, kind: input, shape index: {}]
  %s1 = inlined_call_operand.vmem [shape: bf16[32,64], index: 1, kind: input, shape index: {}]
  %s2 = inlined_call_operand.vmem [shape: bf16[64,4], index: 2, kind: input, shape index: {}]
  %s3 = inlined_call_operand.vmem [shape: bf16[32,64], index: 3, kind: input, shape index: {}]
  %s4 = inlined_call_operand.vmem [shape: bf16[640,64], index: 4, kind: output, shape index: {0}]
  %s5 = inlined_call_operand.vmem [shape: f32[640,4], index: 5, kind: output, shape index: {1}]
  %s6 = inlined_call_operand.vmem [shape: f32[640,64], index: 6, kind: output, shape index: {2}]
  %7 = xla_tuple %s4, %s5, %s6
  %s8 = sld [smem:[#allocation0]]
  $region65: #{tpu_custom_call.1} parent=0
    _
  %s10 = ssub.s32 1, %s8
  %s11 = scalar_select 0, %s10, %s8
  loop: start=0, step=1, limit=7
  $region2: #{tpu_custom_call.1} parent=0 // loop_pre_header
    _
  $region3: #{tpu_custom_call.1} parent=0 // loop_header
    %s13 = sphi 0, %s17
    %p14 = scmp.ge.s32.totalorder %s13, 7
    %s23 = sphi 0, %s25
    %s26 = sphi 0, %s23
    %s27 = sphi 0, %s26
    %s43 = sphi 0, %s27
    %s47 = sphi 0, %s47
    %s49 = sphi 0, %s47
    %s50 = sphi 0, %s49
    %s64 = sphi 0, %s50
    %s68 = sphi 0, %s68
    %s70 = sphi 0, %s68
    %s71 = sphi 0, %s70
    %s85 = sphi 0, %s71
    %s89 = sphi 0, %s89
    %s91 = sphi 0, %s89
    %s92 = sphi 0, %s91
    %s106 = sphi 0, %s92
    %s112 = sphi 0, %s114
    %s115 = sphi 0, %s112
    %s116 = sphi 0, %s115
    %s132 = sphi 0, %s116
    %s138 = sphi 0, %s140
    %s141 = sphi 0, %s138
    %s142 = sphi 0, %s141
    %s158 = sphi 0, %s142
    %s164 = sphi 0, %s166
    %s167 = sphi 0, %s164
    %s168 = sphi 0, %s167
    %s184 = sphi 0, %s168
  $region4: #{tpu_custom_call.1} parent=0 // loop_header_branch
    %16 = sbr.rel (%p14) target = $region8
  $region5: #{tpu_custom_call.1} parent=0 // loop_body
    %s18 = ssub.s32 %s13, 1
    %s19 = ssub.s32 %s13, 2
    %s20 = sadd.s32 %s13, 1
    %s21 = ssub.s32 %s13, %s20
    %p22 = scmp.eq.s32.totalorder %s21, 0
    %s24 = sadd.s32 %s23, 1
    %s25 = scalar_select %p22, %s23, %s24
    %p28 = pneg %p22
    %p29 = scmp.eq.s32.totalorder %s13, 4
    %p30 = por %p28, %p29
    %p31 = scmp.ne.s32.totalorder %s23, %s26
    %p32 = scmp.eq.s32.totalorder %s13, 0
    %p33 = por %p31, %p32
    %p34 = scmp.ne.s32.totalorder %s23, %s26
    %p35 = scmp.eq.s32.totalorder %s18, 4
    %p36 = por %p34, %p35
    %p37 = scmp.ne.s32.totalorder %s26, %s27
    %p38 = scmp.eq.s32.totalorder %s18, 0
    %p39 = por %p37, %p38
    %p40 = scmp.ne.s32.totalorder %s26, %s27
    %p41 = scmp.eq.s32.totalorder %s19, 4
    %p42 = por %p40, %p41
    %p44 = scmp.ne.s32.totalorder %s27, %s43
    %p45 = scmp.eq.s32.totalorder %s19, 0
    %p46 = por %p44, %p45
    %s48 = sadd.s32 %s47, 1
    %p51 = scmp.eq.s32.totalorder %s13, 4
    %p52 = scmp.ne.s32.totalorder %s47, %s49
    %p53 = scmp.eq.s32.totalorder %s13, 0
    %p54 = por %p52, %p53
    %p55 = scmp.ne.s32.totalorder %s47, %s49
    %p56 = scmp.eq.s32.totalorder %s18, 4
    %p57 = por %p55, %p56
    %p58 = scmp.ne.s32.totalorder %s49, %s50
    %p59 = scmp.eq.s32.totalorder %s18, 0
    %p60 = por %p58, %p59
    %p61 = scmp.ne.s32.totalorder %s49, %s50
    %p62 = scmp.eq.s32.totalorder %s19, 4
    %p63 = por %p61, %p62
    %p65 = scmp.ne.s32.totalorder %s50, %s64
    %p66 = scmp.eq.s32.totalorder %s19, 0
    %p67 = por %p65, %p66
    %s69 = sadd.s32 %s68, 1
    %p72 = scmp.eq.s32.totalorder %s13, 4
    %p73 = scmp.ne.s32.totalorder %s68, %s70
    %p74 = scmp.eq.s32.totalorder %s13, 0
    %p75 = por %p73, %p74
    %p76 = scmp.ne.s32.totalorder %s68, %s70
    %p77 = scmp.eq.s32.totalorder %s18, 4
    %p78 = por %p76, %p77
    %p79 = scmp.ne.s32.totalorder %s70, %s71
    %p80 = scmp.eq.s32.totalorder %s18, 0
    %p81 = por %p79, %p80
    %p82 = scmp.ne.s32.totalorder %s70, %s71
    %p83 = scmp.eq.s32.totalorder %s19, 4
    %p84 = por %p82, %p83
    %p86 = scmp.ne.s32.totalorder %s71, %s85
    %p87 = scmp.eq.s32.totalorder %s19, 0
    %p88 = por %p86, %p87
    %s90 = sadd.s32 %s89, 1
    %p93 = scmp.eq.s32.totalorder %s13, 4
    %p94 = scmp.ne.s32.totalorder %s89, %s91
    %p95 = scmp.eq.s32.totalorder %s13, 0
    %p96 = por %p94, %p95
    %p97 = scmp.ne.s32.totalorder %s89, %s91
    %p98 = scmp.eq.s32.totalorder %s18, 4
    %p99 = por %p97, %p98
    %p100 = scmp.ne.s32.totalorder %s91, %s92
    %p101 = scmp.eq.s32.totalorder %s18, 0
    %p102 = por %p100, %p101
    %p103 = scmp.ne.s32.totalorder %s91, %s92
    %p104 = scmp.eq.s32.totalorder %s19, 4
    %p105 = por %p103, %p104
    %p107 = scmp.ne.s32.totalorder %s92, %s106
    %p108 = scmp.eq.s32.totalorder %s19, 0
    %p109 = por %p107, %p108
    %s110 = ssub.s32 %s13, %s20
    %p111 = scmp.eq.s32.totalorder %s110, 0
    %s113 = sadd.s32 %s112, 1
    %s114 = scalar_select %p111, %s112, %s113
    %p117 = pneg %p111
    %p118 = scmp.eq.s32.totalorder %s13, 4
    %p119 = por %p117, %p118
    %p120 = scmp.ne.s32.totalorder %s112, %s115
    %p121 = scmp.eq.s32.totalorder %s13, 0
    %p122 = por %p120, %p121
    %p123 = scmp.ne.s32.totalorder %s112, %s115
    %p124 = scmp.eq.s32.totalorder %s18, 4
    %p125 = por %p123, %p124
    %p126 = scmp.ne.s32.totalorder %s115, %s116
    %p127 = scmp.eq.s32.totalorder %s18, 0
    %p128 = por %p126, %p127
    %p129 = scmp.ne.s32.totalorder %s115, %s116
    %p130 = scmp.eq.s32.totalorder %s19, 4
    %p131 = por %p129, %p130
    %p133 = scmp.ne.s32.totalorder %s116, %s132
    %p134 = scmp.eq.s32.totalorder %s19, 0
    %p135 = por %p133, %p134
    %s136 = ssub.s32 %s13, %s20
    %p137 = scmp.eq.s32.totalorder %s136, 0
    %s139 = sadd.s32 %s138, 1
    %s140 = scalar_select %p137, %s138, %s139
    %p143 = pneg %p137
    %p144 = scmp.eq.s32.totalorder %s13, 4
    %p145 = por %p143, %p144
    %p146 = scmp.ne.s32.totalorder %s138, %s141
    %p147 = scmp.eq.s32.totalorder %s13, 0
    %p148 = por %p146, %p147
    %p149 = scmp.ne.s32.totalorder %s138, %s141
    %p150 = scmp.eq.s32.totalorder %s18, 4
    %p151 = por %p149, %p150
    %p152 = scmp.ne.s32.totalorder %s141, %s142
    %p153 = scmp.eq.s32.totalorder %s18, 0
    %p154 = por %p152, %p153
    %p155 = scmp.ne.s32.totalorder %s141, %s142
    %p156 = scmp.eq.s32.totalorder %s19, 4
    %p157 = por %p155, %p156
    %p159 = scmp.ne.s32.totalorder %s142, %s158
    %p160 = scmp.eq.s32.totalorder %s19, 0
    %p161 = por %p159, %p160
    %s162 = ssub.s32 %s13, %s20
    %p163 = scmp.eq.s32.totalorder %s162, 0
    %s165 = sadd.s32 %s164, 1
    %s166 = scalar_select %p163, %s164, %s165
    %p169 = pneg %p163
    %p170 = scmp.eq.s32.totalorder %s13, 4
    %p171 = por %p169, %p170
    %p172 = scmp.ne.s32.totalorder %s164, %s167
    %p173 = scmp.eq.s32.totalorder %s13, 0
    %p174 = por %p172, %p173
    %p175 = scmp.ne.s32.totalorder %s164, %s167
    %p176 = scmp.eq.s32.totalorder %s18, 4
    %p177 = por %p175, %p176
    %p178 = scmp.ne.s32.totalorder %s167, %s168
    %p179 = scmp.eq.s32.totalorder %s18, 0
    %p180 = por %p178, %p179
    %p181 = scmp.ne.s32.totalorder %s167, %s168
    %p182 = scmp.eq.s32.totalorder %s19, 4
    %p183 = por %p181, %p182
    %p185 = scmp.ne.s32.totalorder %s168, %s184
    %p186 = scmp.eq.s32.totalorder %s19, 0
    %p187 = por %p185, %p186
    %p188 = scmp.le.s32.totalorder 1, %s13
    %p189 = scmp.lt.s32.totalorder %s13, 6
    %p190 = pnand %p188, %p189
    %p191 = pneg %p190
    // Predicated region
    $region9: #{tpu_custom_call.1} parent=5 // pred_check
      _
    $region10: #{tpu_custom_call.1} parent=5 // pred_check_branch
      %193 = sbr.rel (%p190) target = $region12
    $region11: #{tpu_custom_call.1} parent=5 // pred_region
      %s194 = ssub.s32 %s13, 1
      // Predicated region
      $region13: #{tpu_custom_call.1} parent=11 // pred_check
        %p195 = pneg %p60
      $region14: #{tpu_custom_call.1} parent=11 // pred_check_branch
        %197 = sbr.rel (%p195) target = $region16
      $region15: #{tpu_custom_call.1} parent=11 // pred_region
        _
      $region16: #{tpu_custom_call.1} parent=11 // pred_fallthru
        _
      // Predicated region
      $region17: #{tpu_custom_call.1} parent=11 // pred_check
        %p198 = pneg %p81
      $region18: #{tpu_custom_call.1} parent=11 // pred_check_branch
        %200 = sbr.rel (%p198) target = $region20
      $region19: #{tpu_custom_call.1} parent=11 // pred_region
        _
      $region20: #{tpu_custom_call.1} parent=11 // pred_fallthru
        _
      // Predicated region
      $region21: #{tpu_custom_call.1} parent=11 // pred_check
        %p201 = pneg %p102
      $region22: #{tpu_custom_call.1} parent=11 // pred_check_branch
        %203 = sbr.rel (%p201) target = $region24
      $region23: #{tpu_custom_call.1} parent=11 // pred_region
        _
      $region24: #{tpu_custom_call.1} parent=11 // pred_fallthru
        _
    $region12: #{tpu_custom_call.1} parent=5 // pred_fallthru
      _
    %p204 = scmp.lt.s32.totalorder %s13, 5
    // Predicated region
    $region25: #{tpu_custom_call.1} parent=5 // pred_check
      %p205 = pneg %p204
    $region26: #{tpu_custom_call.1} parent=5 // pred_check_branch
      %207 = sbr.rel (%p205) target = $region28
    $region27: #{tpu_custom_call.1} parent=5 // pred_region
      // Predicated region
      $region29: #{tpu_custom_call.1} parent=27 // pred_check
        %p208 = pneg %p33
      $region30: #{tpu_custom_call.1} parent=27 // pred_check_branch
        %210 = sbr.rel (%p208) target = $region32
      $region31: #{tpu_custom_call.1} parent=27 // pred_region
        %s211 = smul.u32 16, %s13
        %p212 = scmp.lt.s32.totalorder %s211, 79
        %s213 = scalar_select %p212, %s211, 79
        %s214 = smul.addr %s213, 8
        %s215 = scalar_lea.vmem %s0, %s214
        %s216 = smul.u32 16, %s13
      $region32: #{tpu_custom_call.1} parent=27 // pred_fallthru
        _
    $region28: #{tpu_custom_call.1} parent=5 // pred_fallthru
      _
    %p217 = scmp.le.s32.totalorder 1, %s13
    %p218 = scmp.lt.s32.totalorder %s13, 6
    %p219 = pnand %p217, %p218
    %p220 = pneg %p219
    // Predicated region
    $region33: #{tpu_custom_call.1} parent=5 // pred_check
      _
    $region34: #{tpu_custom_call.1} parent=5 // pred_check_branch
      %222 = sbr.rel (%p219) target = $region36
    $region35: #{tpu_custom_call.1} parent=5 // pred_region
      %s223 = ssub.s32 %s13, 1
      %s224 = smul.u32 16, %s18
      %p225 = scmp.lt.s32.totalorder %s224, 79
      %s226 = scalar_select %p225, %s224, 79
      %s227 = smul.addr %s226, 8
      %s228 = scalar_lea.vmem %s0, %s227
      %p229 = pneg %p39
      %p230 = pneg %p36
      %p231 = pneg %p60
      %p232 = pneg %p57
      %p233 = pneg %p81
      %p234 = pneg %p78
      %p235 = pneg %p102
      %p236 = pneg %p99
      %p237 = pneg %p128
      %p238 = pneg %p125
      %s239 = smul.u32 16, %s18
      %p240 = scmp.lt.s32.totalorder %s239, 79
      %s241 = scalar_select %p240, %s239, 79
      %s242 = smul.addr %s241, 4
      %s243 = scalar_lea.vmem %s4, %s242
      %p244 = pneg %p154
      %p245 = pneg %p151
      %s246 = smul.u32 16, %s18
      %p247 = scmp.lt.s32.totalorder %s246, 79
      %s248 = scalar_select %p247, %s246, 79
      %s249 = smul.addr %s248, 8
      %s250 = scalar_lea.vmem %s5, %s249
      %p251 = pneg %p180
      %p252 = pneg %p177
      %s253 = smul.u32 16, %s18
      %p254 = scmp.lt.s32.totalorder %s253, 79
      %s255 = scalar_select %p254, %s253, 79
      %s256 = smul.addr %s255, 8
      %s257 = scalar_lea.vmem %s6, %s256
      %s258 = smul.u32 16, %s18
      %p259 = scmp.lt.s32.totalorder %s258, 79
      %s260 = scalar_select %p259, %s258, 79
      %s261 = smul.addr %s260, 8
      %s262 = scalar_lea.vmem %s0, %s261
      %s263 = smul.u32 16, %s18
      %s264 = smul.u32 16, %s18
      %p265 = scmp.lt.s32.totalorder %s264, 79
      %s266 = scalar_select %p265, %s264, 79
      %s267 = smul.addr %s266, 4
      %s268 = scalar_lea.vmem %s4, %s267
      %s269 = smul.u32 16, %s18
      %s270 = smul.u32 16, %s18
      %p271 = scmp.lt.s32.totalorder %s270, 79
      %s272 = scalar_select %p271, %s270, 79
      %s273 = smul.addr %s272, 8
      %s274 = scalar_lea.vmem %s5, %s273
      %s275 = smul.u32 16, %s18
      %s276 = smul.u32 16, %s18
      %p277 = scmp.lt.s32.totalorder %s276, 79
      %s278 = scalar_select %p277, %s276, 79
      %s279 = smul.addr %s278, 8
      %s280 = scalar_lea.vmem %s6, %s279
      %s281 = smul.u32 16, %s18
      %v283 = vld [vmem:[%s262] sm:$0xff]
      %v284 = vld [vmem:[%s262 + $0x8] sm:$0xff]
      %v285 = vld [vmem:[%s262 + $0x10] sm:$0xff]
      %v286 = vld [vmem:[%s262 + $0x18] sm:$0xff]
      %v287 = vld [vmem:[%s262 + $0x20] sm:$0xff]
      %v288 = vld [vmem:[%s262 + $0x28] sm:$0xff]
      %v289 = vld [vmem:[%s262 + $0x30] sm:$0xff]
      %v290 = vld [vmem:[%s262 + $0x38] sm:$0xff]
      %v291 = vld [vmem:[%s262 + $0x40] sm:$0xff]
      %v292 = vld [vmem:[%s262 + $0x48] sm:$0xff]
      %v293 = vld [vmem:[%s262 + $0x50] sm:$0xff]
      %v294 = vld [vmem:[%s262 + $0x58] sm:$0xff]
      %v295 = vld [vmem:[%s262 + $0x60] sm:$0xff]
      %v296 = vld [vmem:[%s262 + $0x68] sm:$0xff]
      %v297 = vld [vmem:[%s262 + $0x70] sm:$0xff]
      %v298 = vld [vmem:[%s262 + $0x78] sm:$0xff]
      %v299 = vpack.c.bf16 %v284, %v283
      %v300 = vpack.c.bf16 %v286, %v285
      %v301 = vpack.c.bf16 %v288, %v287
      %v302 = vpack.c.bf16 %v290, %v289
      %v303 = vpack.c.bf16 %v292, %v291
      %v304 = vpack.c.bf16 %v294, %v293
      %v305 = vpack.c.bf16 %v296, %v295
      %v306 = vpack.c.bf16 %v298, %v297
      %v307 = vld [vmem:[%s1] sm:$0xf]
      %v308 = vld [vmem:[%s1 + $0x4] sm:$0xf]
      %v309 = vld [vmem:[%s1 + $0x8] sm:$0xf]
      %v310 = vld [vmem:[%s1 + $0xc] sm:$0xf]
      %v315 = vunpack.c.l.b16 %v307
      %v316 = vunpack.c.l.b16 %v308
      %v317 = vunpack.c.l.b16 %v309
      %v318 = vunpack.c.l.b16 %v310
      %v319 = vpack.c.b16 %v316, %v315
      %v320 = vpack.c.b16 %v318, %v317
      %vm323 = vcmask 261120
      %v325 = vsel %vm323, %v299, 0
      %v328 = vsel %vm323, %v300, 0
      %v331 = vsel %vm323, %v301, 0
      %v334 = vsel %vm323, %v302, 0
      %v337 = vsel %vm323, %v303, 0
      %v340 = vsel %vm323, %v304, 0
      %v343 = vsel %vm323, %v305, 0
      %v346 = vsel %vm323, %v306, 0
      %348 = vmatprep.subr.bf16.mxu0 0
      %349 = vmatpush1.bf16.msra.mxu0 %v319
      %350 = vmatprep.subr.bf16.mxu0 0
      %351 = vmatpush1.bf16.msra.mxu0 %v320
      %352 = vmatprep.subr.bf16.mxu0 0
      %353 = vmatpush1.bf16.msra.mxu0 0
      %354 = vmatprep.subr.bf16.mxu0 0
      %355 = vmatpush1.bf16.msra.mxu0 0
      %356 = vmatprep.subr.bf16.mxu0 0
      %357 = vmatpush1.bf16.msra.mxu0 0
      %358 = vmatprep.subr.bf16.mxu0 0
      %359 = vmatpush1.bf16.msra.mxu0 0
      %360 = vmatprep.subr.bf16.mxu0 0
      %361 = vmatpush1.bf16.msra.mxu0 0
      %362 = vmatprep.subr.bf16.mxu0 0
      %363 = vmatpush1.bf16.msra.mxu0 0
      %364 = vmatprep.subr.bf16.mxu0 0
      %365 = vmatpush1.bf16.msra.mxu0 0
      %366 = vmatprep.subr.bf16.mxu0 0
      %367 = vmatpush1.bf16.msra.mxu0 0
      %368 = vmatprep.subr.bf16.mxu0 0
      %369 = vmatpush1.bf16.msra.mxu0 0
      %370 = vmatprep.subr.bf16.mxu0 0
      %371 = vmatpush1.bf16.msra.mxu0 0
      %372 = vmatprep.subr.bf16.mxu0 0
      %373 = vmatpush1.bf16.msra.mxu0 0
      %374 = vmatprep.subr.bf16.mxu0 0
      %375 = vmatpush1.bf16.msra.mxu0 0
      %376 = vmatprep.subr.bf16.mxu0 0
      %377 = vmatpush1.bf16.msra.mxu0 0
      %378 = vmatprep.subr.bf16.mxu0 0
      %379 = vmatpush1.bf16.msra.mxu0 0
      %380 = vmatprep.mubr.bf16.mxu0 0
      %381 = vmatmul.mubr.bf16.gmra.mrb[0].mxu0 %v325
      %v382 = vpop.f32.mrb[0].mxu0
      %v383 = vadd.f32 0.0, %v382
      %v384 = vpop.f32.mrb[0].mxu0
      %v385 = vpop.f32.mrb[0].mxu0
      %v386 = vadd.f32 0.0, %v385
      %v387 = vpop.f32.mrb[0].mxu0
      %388 = vmatprep.mubr.bf16.mxu0 0
      %389 = vmatmul.mubr.bf16.gmra.mrb[0].mxu0 %v328
      %v390 = vpop.f32.mrb[0].mxu0
      %v391 = vadd.f32 0.0, %v390
      %v392 = vpop.f32.mrb[0].mxu0
      %v393 = vpop.f32.mrb[0].mxu0
      %v394 = vadd.f32 0.0, %v393
      %v395 = vpop.f32.mrb[0].mxu0
      %396 = vmatprep.mubr.bf16.mxu0 0
      %397 = vmatmul.mubr.bf16.gmra.mrb[0].mxu0 %v331
      %v398 = vpop.f32.mrb[0].mxu0
      %v399 = vadd.f32 0.0, %v398
      %v400 = vpop.f32.mrb[0].mxu0
      %v401 = vpop.f32.mrb[0].mxu0
      %v402 = vadd.f32 0.0, %v401
      %v403 = vpop.f32.mrb[0].mxu0
      %404 = vmatprep.mubr.bf16.mxu0 0
      %405 = vmatmul.mubr.bf16.gmra.mrb[0].mxu0 %v334
      %v406 = vpop.f32.mrb[0].mxu0
      %v407 = vadd.f32 0.0, %v406
      %v408 = vpop.f32.mrb[0].mxu0
      %v409 = vpop.f32.mrb[0].mxu0
      %v410 = vadd.f32 0.0, %v409
      %v411 = vpop.f32.mrb[0].mxu0
      %412 = vmatprep.mubr.bf16.mxu0 0
      %413 = vmatmul.mubr.bf16.gmra.mrb[0].mxu0 %v337
      %v414 = vpop.f32.mrb[0].mxu0
      %v415 = vadd.f32 0.0, %v414
      %v416 = vpop.f32.mrb[0].mxu0
      %v417 = vpop.f32.mrb[0].mxu0
      %v418 = vadd.f32 0.0, %v417
      %v419 = vpop.f32.mrb[0].mxu0
      %420 = vmatprep.mubr.bf16.mxu0 0
      %421 = vmatmul.mubr.bf16.gmra.mrb[0].mxu0 %v340
      %v422 = vpop.f32.mrb[0].mxu0
      %v423 = vadd.f32 0.0, %v422
      %v424 = vpop.f32.mrb[0].mxu0
      %v425 = vpop.f32.mrb[0].mxu0
      %v426 = vadd.f32 0.0, %v425
      %v427 = vpop.f32.mrb[0].mxu0
      %428 = vmatprep.mubr.bf16.mxu0 0
      %429 = vmatmul.mubr.bf16.gmra.mrb[0].mxu0 %v343
      %v430 = vpop.f32.mrb[0].mxu0
      %v431 = vadd.f32 0.0, %v430
      %v432 = vpop.f32.mrb[0].mxu0
      %v433 = vpop.f32.mrb[0].mxu0
      %v434 = vadd.f32 0.0, %v433
      %v435 = vpop.f32.mrb[0].mxu0
      %436 = vmatprep.mubr.bf16.mxu0 0
      %437 = vmatmul.mubr.bf16.gmra.mrb[0].mxu0 %v346
      %v438 = vpop.f32.mrb[0].mxu0
      %v439 = vadd.f32 0.0, %v438
      %v440 = vpop.f32.mrb[0].mxu0
      %v441 = vpop.f32.mrb[0].mxu0
      %v442 = vadd.f32 0.0, %v441
      %v443 = vpop.f32.mrb[0].mxu0
      %444 = vdwg.mxu0
      %v445 = vpack.c.bf16 %v386, %v383
      %v446 = vpack.c.bf16 %v394, %v391
      %v447 = vpack.c.bf16 %v402, %v399
      %v448 = vpack.c.bf16 %v410, %v407
      %v449 = vpack.c.bf16 %v418, %v415
      %v450 = vpack.c.bf16 %v426, %v423
      %v451 = vpack.c.bf16 %v434, %v431
      %v452 = vpack.c.bf16 %v442, %v439
      %v461 = vunpack.c.l.b16 %v445
      %v462 = vunpack.c.h.b16 %v445
      %v463 = vunpack.c.l.b16 %v446
      %v464 = vunpack.c.h.b16 %v446
      %v465 = vunpack.c.l.b16 %v447
      %v466 = vunpack.c.h.b16 %v447
      %v467 = vunpack.c.l.b16 %v448
      %v468 = vunpack.c.h.b16 %v448
      %v469 = vunpack.c.l.b16 %v449
      %v470 = vunpack.c.h.b16 %v449
      %v471 = vunpack.c.l.b16 %v450
      %v472 = vunpack.c.h.b16 %v450
      %v473 = vunpack.c.l.b16 %v451
      %v474 = vunpack.c.h.b16 %v451
      %v475 = vunpack.c.l.b16 %v452
      %v476 = vunpack.c.h.b16 %v452
      %v477 = vpack.c.b16 %v461, %v461
      %v478 = vpack.c.b16 %v462, %v462
      %v479 = vpack.c.b16 %v463, %v463
      %v480 = vpack.c.b16 %v464, %v464
      %v481 = vpack.c.b16 %v465, %v465
      %v482 = vpack.c.b16 %v466, %v466
      %v483 = vpack.c.b16 %v467, %v467
      %v484 = vpack.c.b16 %v468, %v468
      %v485 = vpack.c.b16 %v469, %v469
      %v486 = vpack.c.b16 %v470, %v470
      %v487 = vpack.c.b16 %v471, %v471
      %v488 = vpack.c.b16 %v472, %v472
      %v489 = vpack.c.b16 %v473, %v473
      %v490 = vpack.c.b16 %v474, %v474
      %v491 = vpack.c.b16 %v475, %v475
      %v492 = vpack.c.b16 %v476, %v476
      %vm509 = vcmask 519168
      %510 = vst.msk [vmem:[%s268] sm:$0xf] %vm509, %v477
      %511 = vst.msk [vmem:[%s268 + $0x4] sm:$0xf] %vm509, %v478
      %512 = vst.msk [vmem:[%s268 + $0x8] sm:$0xf] %vm509, %v479
      %513 = vst.msk [vmem:[%s268 + $0xc] sm:$0xf] %vm509, %v480
      %514 = vst.msk [vmem:[%s268 + $0x10] sm:$0xf] %vm509, %v481
      %515 = vst.msk [vmem:[%s268 + $0x14] sm:$0xf] %vm509, %v482
      %516 = vst.msk [vmem:[%s268 + $0x18] sm:$0xf] %vm509, %v483
      %517 = vst.msk [vmem:[%s268 + $0x1c] sm:$0xf] %vm509, %v484
      %518 = vst.msk [vmem:[%s268 + $0x20] sm:$0xf] %vm509, %v485
      %519 = vst.msk [vmem:[%s268 + $0x24] sm:$0xf] %vm509, %v486
      %520 = vst.msk [vmem:[%s268 + $0x28] sm:$0xf] %vm509, %v487
      %521 = vst.msk [vmem:[%s268 + $0x2c] sm:$0xf] %vm509, %v488
      %522 = vst.msk [vmem:[%s268 + $0x30] sm:$0xf] %vm509, %v489
      %523 = vst.msk [vmem:[%s268 + $0x34] sm:$0xf] %vm509, %v490
      %524 = vst.msk [vmem:[%s268 + $0x38] sm:$0xf] %vm509, %v491
      %525 = vst.msk [vmem:[%s268 + $0x3c] sm:$0xf] %vm509, %v492
      %v526 = vld [vmem:[%s2] sm:$0xf]
      %v527 = vld [vmem:[%s2 + $0x4] sm:$0xf]
      %v528 = vld [vmem:[%s2 + $0x8] sm:$0xf]
      %v529 = vld [vmem:[%s2 + $0xc] sm:$0xf]
      %v530 = vld [vmem:[%s2 + $0x10] sm:$0xf]
      %v531 = vld [vmem:[%s2 + $0x14] sm:$0xf]
      %v532 = vld [vmem:[%s2 + $0x18] sm:$0xf]
      %v533 = vld [vmem:[%s2 + $0x1c] sm:$0xf]
      %v542 = vunpack.c.l.b16 %v526
      %v543 = vunpack.c.l.b16 %v527
      %v544 = vunpack.c.l.b16 %v528
      %v545 = vunpack.c.l.b16 %v529
      %v546 = vunpack.c.l.b16 %v530
      %v547 = vunpack.c.l.b16 %v531
      %v548 = vunpack.c.l.b16 %v532
      %v549 = vunpack.c.l.b16 %v533
      %v550 = vpack.c.b16 %v543, %v542
      %v551 = vpack.c.b16 %v545, %v544
      %v552 = vpack.c.b16 %v547, %v546
      %v553 = vpack.c.b16 %v549, %v548
      %vm558 = vcmask 523264
      %v560 = vsel %vm558, %v445, 0
      %v563 = vsel %vm558, %v446, 0
      %v566 = vsel %vm558, %v447, 0
      %v569 = vsel %vm558, %v448, 0
      %v572 = vsel %vm558, %v449, 0
      %v575 = vsel %vm558, %v450, 0
      %v578 = vsel %vm558, %v451, 0
      %v581 = vsel %vm558, %v452, 0
      %583 = vmatprep.subr.bf16.mxu0 0
      %584 = vmatpush1.bf16.msra.mxu0 %v550
      %585 = vmatprep.subr.bf16.mxu0 0
      %586 = vmatpush1.bf16.msra.mxu0 %v551
      %587 = vmatprep.subr.bf16.mxu0 0
      %588 = vmatpush1.bf16.msra.mxu0 %v552
      %589 = vmatprep.subr.bf16.mxu0 0
      %590 = vmatpush1.bf16.msra.mxu0 %v553
      %591 = vmatprep.subr.bf16.mxu0 0
      %592 = vmatpush1.bf16.msra.mxu0 0
      %593 = vmatprep.subr.bf16.mxu0 0
      %594 = vmatpush1.bf16.msra.mxu0 0
      %595 = vmatprep.subr.bf16.mxu0 0
      %596 = vmatpush1.bf16.msra.mxu0 0
      %597 = vmatprep.subr.bf16.mxu0 0
      %598 = vmatpush1.bf16.msra.mxu0 0
      %599 = vmatprep.subr.bf16.mxu0 0
      %600 = vmatpush1.bf16.msra.mxu0 0
      %601 = vmatprep.subr.bf16.mxu0 0
      %602 = vmatpush1.bf16.msra.mxu0 0
      %603 = vmatprep.subr.bf16.mxu0 0
      %604 = vmatpush1.bf16.msra.mxu0 0
      %605 = vmatprep.subr.bf16.mxu0 0
      %606 = vmatpush1.bf16.msra.mxu0 0
      %607 = vmatprep.subr.bf16.mxu0 0
      %608 = vmatpush1.bf16.msra.mxu0 0
      %609 = vmatprep.subr.bf16.mxu0 0
      %610 = vmatpush1.bf16.msra.mxu0 0
      %611 = vmatprep.subr.bf16.mxu0 0
      %612 = vmatpush1.bf16.msra.mxu0 0
      %613 = vmatprep.subr.bf16.mxu0 0
      %614 = vmatpush1.bf16.msra.mxu0 0
      %615 = vmatprep.mubr.bf16.mxu0 0
      %616 = vmatmul.mubr.bf16.gmra.mrb[0].mxu0 %v560
      %v617 = vpop.f32.mrb[0].mxu0
      %v618 = vadd.f32 0.0, %v617
      %v619 = vpop.f32.mrb[0].mxu0
      %v620 = vpop.f32.mrb[0].mxu0
      %v621 = vadd.f32 0.0, %v620
      %v622 = vpop.f32.mrb[0].mxu0
      %623 = vmatprep.mubr.bf16.mxu0 0
      %624 = vmatmul.mubr.bf16.gmra.mrb[0].mxu0 %v563
      %v625 = vpop.f32.mrb[0].mxu0
      %v626 = vadd.f32 0.0, %v625
      %v627 = vpop.f32.mrb[0].mxu0
      %v628 = vpop.f32.mrb[0].mxu0
      %v629 = vadd.f32 0.0, %v628
      %v630 = vpop.f32.mrb[0].mxu0
      %631 = vmatprep.mubr.bf16.mxu0 0
      %632 = vmatmul.mubr.bf16.gmra.mrb[0].mxu0 %v566
      %v633 = vpop.f32.mrb[0].mxu0
      %v634 = vadd.f32 0.0, %v633
      %v635 = vpop.f32.mrb[0].mxu0
      %v636 = vpop.f32.mrb[0].mxu0
      %v637 = vadd.f32 0.0, %v636
      %v638 = vpop.f32.mrb[0].mxu0
      %639 = vmatprep.mubr.bf16.mxu0 0
      %640 = vmatmul.mubr.bf16.gmra.mrb[0].mxu0 %v569
      %v641 = vpop.f32.mrb[0].mxu0
      %v642 = vadd.f32 0.0, %v641
      %v643 = vpop.f32.mrb[0].mxu0
      %v644 = vpop.f32.mrb[0].mxu0
      %v645 = vadd.f32 0.0, %v644
      %v646 = vpop.f32.mrb[0].mxu0
      %647 = vmatprep.mubr.bf16.mxu0 0
      %648 = vmatmul.mubr.bf16.gmra.mrb[0].mxu0 %v572
      %v649 = vpop.f32.mrb[0].mxu0
      %v650 = vadd.f32 0.0, %v649
      %v651 = vpop.f32.mrb[0].mxu0
      %v652 = vpop.f32.mrb[0].mxu0
      %v653 = vadd.f32 0.0, %v652
      %v654 = vpop.f32.mrb[0].mxu0
      %655 = vmatprep.mubr.bf16.mxu0 0
      %656 = vmatmul.mubr.bf16.gmra.mrb[0].mxu0 %v575
      %v657 = vpop.f32.mrb[0].mxu0
      %v658 = vadd.f32 0.0, %v657
      %v659 = vpop.f32.mrb[0].mxu0
      %v660 = vpop.f32.mrb[0].mxu0
      %v661 = vadd.f32 0.0, %v660
      %v662 = vpop.f32.mrb[0].mxu0
      %663 = vmatprep.mubr.bf16.mxu0 0
      %664 = vmatmul.mubr.bf16.gmra.mrb[0].mxu0 %v578
      %v665 = vpop.f32.mrb[0].mxu0
      %v666 = vadd.f32 0.0, %v665
      %v667 = vpop.f32.mrb[0].mxu0
      %v668 = vpop.f32.mrb[0].mxu0
      %v669 = vadd.f32 0.0, %v668
      %v670 = vpop.f32.mrb[0].mxu0
      %671 = vmatprep.mubr.bf16.mxu0 0
      %672 = vmatmul.mubr.bf16.gmra.mrb[0].mxu0 %v581
      %v673 = vpop.f32.mrb[0].mxu0
      %v674 = vadd.f32 0.0, %v673
      %v675 = vpop.f32.mrb[0].mxu0
      %v676 = vpop.f32.mrb[0].mxu0
      %v677 = vadd.f32 0.0, %v676
      %v678 = vpop.f32.mrb[0].mxu0
      %679 = vdwg.mxu0
      %vm680 = vcmask 31744
      %681 = vst.msk [vmem:[%s274] sm:$0xff] %vm680, %v618
      %682 = vst.msk [vmem:[%s274 + $0x8] sm:$0xff] %vm680, %v621
      %683 = vst.msk [vmem:[%s274 + $0x10] sm:$0xff] %vm680, %v626
      %684 = vst.msk [vmem:[%s274 + $0x18] sm:$0xff] %vm680, %v629
      %685 = vst.msk [vmem:[%s274 + $0x20] sm:$0xff] %vm680, %v634
      %686 = vst.msk [vmem:[%s274 + $0x28] sm:$0xff] %vm680, %v637
      %687 = vst.msk [vmem:[%s274 + $0x30] sm:$0xff] %vm680, %v642
      %688 = vst.msk [vmem:[%s274 + $0x38] sm:$0xff] %vm680, %v645
      %689 = vst.msk [vmem:[%s274 + $0x40] sm:$0xff] %vm680, %v650
      %690 = vst.msk [vmem:[%s274 + $0x48] sm:$0xff] %vm680, %v653
      %691 = vst.msk [vmem:[%s274 + $0x50] sm:$0xff] %vm680, %v658
      %692 = vst.msk [vmem:[%s274 + $0x58] sm:$0xff] %vm680, %v661
      %693 = vst.msk [vmem:[%s274 + $0x60] sm:$0xff] %vm680, %v666
      %694 = vst.msk [vmem:[%s274 + $0x68] sm:$0xff] %vm680, %v669
      %695 = vst.msk [vmem:[%s274 + $0x70] sm:$0xff] %vm680, %v674
      %696 = vst.msk [vmem:[%s274 + $0x78] sm:$0xff] %vm680, %v677
      %v697 = vld [vmem:[%s3] sm:$0xf]
      %v698 = vld [vmem:[%s3 + $0x4] sm:$0xf]
      %v699 = vld [vmem:[%s3 + $0x8] sm:$0xf]
      %v700 = vld [vmem:[%s3 + $0xc] sm:$0xf]
      %v705 = vunpack.c.l.b16 %v697
      %v706 = vunpack.c.l.b16 %v698
      %v707 = vunpack.c.l.b16 %v699
      %v708 = vunpack.c.l.b16 %v700
      %v709 = vpack.c.b16 %v706, %v705
      %v710 = vpack.c.b16 %v708, %v707
      %713 = vmatprep.subr.bf16.mxu0 0
      %714 = vmatpush1.bf16.msra.mxu0 %v709
      %715 = vmatprep.subr.bf16.mxu0 0
      %716 = vmatpush1.bf16.msra.mxu0 %v710
      %717 = vmatprep.subr.bf16.mxu0 0
      %718 = vmatpush1.bf16.msra.mxu0 0
      %719 = vmatprep.subr.bf16.mxu0 0
      %720 = vmatpush1.bf16.msra.mxu0 0
      %721 = vmatprep.subr.bf16.mxu0 0
      %722 = vmatpush1.bf16.msra.mxu0 0
      %723 = vmatprep.subr.bf16.mxu0 0
      %724 = vmatpush1.bf16.msra.mxu0 0
      %725 = vmatprep.subr.bf16.mxu0 0
      %726 = vmatpush1.bf16.msra.mxu0 0
      %727 = vmatprep.subr.bf16.mxu0 0
      %728 = vmatpush1.bf16.msra.mxu0 0
      %729 = vmatprep.subr.bf16.mxu0 0
      %730 = vmatpush1.bf16.msra.mxu0 0
      %731 = vmatprep.subr.bf16.mxu0 0
      %732 = vmatpush1.bf16.msra.mxu0 0
      %733 = vmatprep.subr.bf16.mxu0 0
      %734 = vmatpush1.bf16.msra.mxu0 0
      %735 = vmatprep.subr.bf16.mxu0 0
      %736 = vmatpush1.bf16.msra.mxu0 0
      %737 = vmatprep.subr.bf16.mxu0 0
      %738 = vmatpush1.bf16.msra.mxu0 0
      %739 = vmatprep.subr.bf16.mxu0 0
      %740 = vmatpush1.bf16.msra.mxu0 0
      %741 = vmatprep.subr.bf16.mxu0 0
      %742 = vmatpush1.bf16.msra.mxu0 0
      %743 = vmatprep.subr.bf16.mxu0 0
      %744 = vmatpush1.bf16.msra.mxu0 0
      %745 = vmatprep.mubr.bf16.mxu0 0
      %746 = vmatmul.mubr.bf16.gmra.mrb[0].mxu0 %v325
      %v747 = vpop.f32.mrb[0].mxu0
      %v748 = vadd.f32 0.0, %v747
      %v749 = vpop.f32.mrb[0].mxu0
      %v750 = vpop.f32.mrb[0].mxu0
      %v751 = vadd.f32 0.0, %v750
      %v752 = vpop.f32.mrb[0].mxu0
      %753 = vmatprep.mubr.bf16.mxu0 0
      %754 = vmatmul.mubr.bf16.gmra.mrb[0].mxu0 %v328
      %v755 = vpop.f32.mrb[0].mxu0
      %v756 = vadd.f32 0.0, %v755
      %v757 = vpop.f32.mrb[0].mxu0
      %v758 = vpop.f32.mrb[0].mxu0
      %v759 = vadd.f32 0.0, %v758
      %v760 = vpop.f32.mrb[0].mxu0
      %761 = vmatprep.mubr.bf16.mxu0 0
      %762 = vmatmul.mubr.bf16.gmra.mrb[0].mxu0 %v331
      %v763 = vpop.f32.mrb[0].mxu0
      %v764 = vadd.f32 0.0, %v763
      %v765 = vpop.f32.mrb[0].mxu0
      %v766 = vpop.f32.mrb[0].mxu0
      %v767 = vadd.f32 0.0, %v766
      %v768 = vpop.f32.mrb[0].mxu0
      %769 = vmatprep.mubr.bf16.mxu0 0
      %770 = vmatmul.mubr.bf16.gmra.mrb[0].mxu0 %v334
      %v771 = vpop.f32.mrb[0].mxu0
      %v772 = vadd.f32 0.0, %v771
      %v773 = vpop.f32.mrb[0].mxu0
      %v774 = vpop.f32.mrb[0].mxu0
      %v775 = vadd.f32 0.0, %v774
      %v776 = vpop.f32.mrb[0].mxu0
      %777 = vmatprep.mubr.bf16.mxu0 0
      %778 = vmatmul.mubr.bf16.gmra.mrb[0].mxu0 %v337
      %v779 = vpop.f32.mrb[0].mxu0
      %v780 = vadd.f32 0.0, %v779
      %v781 = vpop.f32.mrb[0].mxu0
      %v782 = vpop.f32.mrb[0].mxu0
      %v783 = vadd.f32 0.0, %v782
      %v784 = vpop.f32.mrb[0].mxu0
      %785 = vmatprep.mubr.bf16.mxu0 0
      %786 = vmatmul.mubr.bf16.gmra.mrb[0].mxu0 %v340
      %v787 = vpop.f32.mrb[0].mxu0
      %v788 = vadd.f32 0.0, %v787
      %v789 = vpop.f32.mrb[0].mxu0
      %v790 = vpop.f32.mrb[0].mxu0
      %v791 = vadd.f32 0.0, %v790
      %v792 = vpop.f32.mrb[0].mxu0
      %793 = vmatprep.mubr.bf16.mxu0 0
      %794 = vmatmul.mubr.bf16.gmra.mrb[0].mxu0 %v343
      %v795 = vpop.f32.mrb[0].mxu0
      %v796 = vadd.f32 0.0, %v795
      %v797 = vpop.f32.mrb[0].mxu0
      %v798 = vpop.f32.mrb[0].mxu0
      %v799 = vadd.f32 0.0, %v798
      %v800 = vpop.f32.mrb[0].mxu0
      %801 = vmatprep.mubr.bf16.mxu0 0
      %802 = vmatmul.mubr.bf16.gmra.mrb[0].mxu0 %v346
      %v803 = vpop.f32.mrb[0].mxu0
      %v804 = vadd.f32 0.0, %v803
      %v805 = vpop.f32.mrb[0].mxu0
      %v806 = vpop.f32.mrb[0].mxu0
      %v807 = vadd.f32 0.0, %v806
      %v808 = vpop.f32.mrb[0].mxu0
      %809 = vdwg.mxu0
      %810 = vst.msk [vmem:[%s280] sm:$0xff] %vm558, %v748
      %811 = vst.msk [vmem:[%s280 + $0x8] sm:$0xff] %vm558, %v751
      %812 = vst.msk [vmem:[%s280 + $0x10] sm:$0xff] %vm558, %v756
      %813 = vst.msk [vmem:[%s280 + $0x18] sm:$0xff] %vm558, %v759
      %814 = vst.msk [vmem:[%s280 + $0x20] sm:$0xff] %vm558, %v764
      %815 = vst.msk [vmem:[%s280 + $0x28] sm:$0xff] %vm558, %v767
      %816 = vst.msk [vmem:[%s280 + $0x30] sm:$0xff] %vm558, %v772
      %817 = vst.msk [vmem:[%s280 + $0x38] sm:$0xff] %vm558, %v775
      %818 = vst.msk [vmem:[%s280 + $0x40] sm:$0xff] %vm558, %v780
      %819 = vst.msk [vmem:[%s280 + $0x48] sm:$0xff] %vm558, %v783
      %820 = vst.msk [vmem:[%s280 + $0x50] sm:$0xff] %vm558, %v788
      %821 = vst.msk [vmem:[%s280 + $0x58] sm:$0xff] %vm558, %v791
      %822 = vst.msk [vmem:[%s280 + $0x60] sm:$0xff] %vm558, %v796
      %823 = vst.msk [vmem:[%s280 + $0x68] sm:$0xff] %vm558, %v799
      %824 = vst.msk [vmem:[%s280 + $0x70] sm:$0xff] %vm558, %v804
      %825 = vst.msk [vmem:[%s280 + $0x78] sm:$0xff] %vm558, %v807
      %s826 = smul.u32 16, %s18
      %p827 = scmp.lt.s32.totalorder %s826, 79
      %s828 = scalar_select %p827, %s826, 79
      %s829 = smul.addr %s828, 4
      %s830 = scalar_lea.vmem %s4, %s829
      %s831 = smul.u32 16, %s18
      %p832 = scmp.lt.s32.totalorder %s831, 79
      %s833 = scalar_select %p832, %s831, 79
      %s834 = smul.addr %s833, 8
      %s835 = scalar_lea.vmem %s5, %s834
      %s836 = smul.u32 16, %s18
      %p837 = scmp.lt.s32.totalorder %s836, 79
      %s838 = scalar_select %p837, %s836, 79
      %s839 = smul.addr %s838, 8
      %s840 = scalar_lea.vmem %s6, %s839
      // Predicated region
      $region37: #{tpu_custom_call.1} parent=35 // pred_check
        %p841 = pneg %p125
      $region38: #{tpu_custom_call.1} parent=35 // pred_check_branch
        %843 = sbr.rel (%p841) target = $region40
      $region39: #{tpu_custom_call.1} parent=35 // pred_region
        %s844 = smul.u32 16, %s18
      $region40: #{tpu_custom_call.1} parent=35 // pred_fallthru
        _
      // Predicated region
      $region41: #{tpu_custom_call.1} parent=35 // pred_check
        %p845 = pneg %p151
      $region42: #{tpu_custom_call.1} parent=35 // pred_check_branch
        %847 = sbr.rel (%p845) target = $region44
      $region43: #{tpu_custom_call.1} parent=35 // pred_region
        %s848 = smul.u32 16, %s18
      $region44: #{tpu_custom_call.1} parent=35 // pred_fallthru
        _
      // Predicated region
      $region45: #{tpu_custom_call.1} parent=35 // pred_check
        %p849 = pneg %p177
      $region46: #{tpu_custom_call.1} parent=35 // pred_check_branch
        %851 = sbr.rel (%p849) target = $region48
      $region47: #{tpu_custom_call.1} parent=35 // pred_region
        %s852 = smul.u32 16, %s18
      $region48: #{tpu_custom_call.1} parent=35 // pred_fallthru
        _
    $region36: #{tpu_custom_call.1} parent=5 // pred_fallthru
      _
    %p853 = scmp.le.s32.totalorder 2, %s13
    // Predicated region
    $region49: #{tpu_custom_call.1} parent=5 // pred_check
      %p854 = pneg %p853
    $region50: #{tpu_custom_call.1} parent=5 // pred_check_branch
      %856 = sbr.rel (%p854) target = $region52
    $region51: #{tpu_custom_call.1} parent=5 // pred_region
      %s857 = ssub.s32 %s13, 2
      // Predicated region
      $region53: #{tpu_custom_call.1} parent=51 // pred_check
        %p858 = pneg %p131
      $region54: #{tpu_custom_call.1} parent=51 // pred_check_branch
        %860 = sbr.rel (%p858) target = $region56
      $region55: #{tpu_custom_call.1} parent=51 // pred_region
        %s861 = smul.u32 16, %s19
        %p862 = scmp.lt.s32.totalorder %s861, 79
        %s863 = scalar_select %p862, %s861, 79
        %s864 = smul.addr %s863, 4
        %s865 = scalar_lea.vmem %s4, %s864
      $region56: #{tpu_custom_call.1} parent=51 // pred_fallthru
        _
      // Predicated region
      $region57: #{tpu_custom_call.1} parent=51 // pred_check
        %p866 = pneg %p157
      $region58: #{tpu_custom_call.1} parent=51 // pred_check_branch
        %868 = sbr.rel (%p866) target = $region60
      $region59: #{tpu_custom_call.1} parent=51 // pred_region
        %s869 = smul.u32 16, %s19
        %p870 = scmp.lt.s32.totalorder %s869, 79
        %s871 = scalar_select %p870, %s869, 79
        %s872 = smul.addr %s871, 8
        %s873 = scalar_lea.vmem %s5, %s872
      $region60: #{tpu_custom_call.1} parent=51 // pred_fallthru
        _
      // Predicated region
      $region61: #{tpu_custom_call.1} parent=51 // pred_check
        %p874 = pneg %p183
      $region62: #{tpu_custom_call.1} parent=51 // pred_check_branch
        %876 = sbr.rel (%p874) target = $region64
      $region63: #{tpu_custom_call.1} parent=51 // pred_region
        %s877 = smul.u32 16, %s19
        %p878 = scmp.lt.s32.totalorder %s877, 79
        %s879 = scalar_select %p878, %s877, 79
        %s880 = smul.addr %s879, 8
        %s881 = scalar_lea.vmem %s6, %s880
      $region64: #{tpu_custom_call.1} parent=51 // pred_fallthru
        _
    $region52: #{tpu_custom_call.1} parent=5 // pred_fallthru
      _
  $region6: #{tpu_custom_call.1} parent=0 // loop_footer
    %s17 = sadd.s32 1, %s13
  $region7: #{tpu_custom_call.1} parent=0 // loop_footer_branch
    %12 = sbr.rel target = $region3
  $region8: #{tpu_custom_call.1} parent=0 // loop_exit
    _

</llo_original>
